<compile_context>
chip_gen: v6e
topology: v6e:2x2x1
jax: 0.10.0
libtpu: 0.0.40
codegen_flags: <defaults>
</compile_context>

<pallas_src>
import functools

import jax
import jax.numpy as jnp
import numpy as np
from jax.experimental import pallas as pl
from jax.experimental.pallas import tpu as pltpu


def _round_up(x, m):
    return ((x + m - 1) // m) * m


def _vmem_capacity_bytes():
    try:
        return int(pltpu.get_tpu_info().vmem_capacity_bytes)
    except Exception:
        return 64 << 20  # conservative fallback: v7x per-TensorCore VMEM


def _sublane_multiple(itemsize):
    # Rows per (sublane, lane) tile: f32 -> 8, bf16 -> 16, int8/fp8 -> 32.
    return 8 * max(1, 4 // int(itemsize))


# --------------------------- fused single-pass kernel ---------------------------

def _se_fused_kernel(x_ref, w1_ref, w2_ref, o_ref):
    """x_ref/o_ref: (Bt, C, HW); w1_ref: (C, Cr); w2_ref: (Cr, C); weights f32."""
    x = x_ref[...]                                              # native dtype
    inv_hw = jnp.float32(1.0 / x.shape[-1])
    # Lane-axis reduction with f32 accumulation.  For bf16 inputs, if profiling
    # shows a materialized full f32 copy, switch to a chunked sum / MXU dot-with-ones.
    pooled = jnp.sum(x, axis=-1, dtype=jnp.float32) * inv_hw    # (Bt, C) f32

    # Excitation: FC -> ReLU -> FC -> Sigmoid (M = Bt rows on the MXU).
    h = jnp.maximum(
        jnp.dot(pooled, w1_ref[...], preferred_element_type=jnp.float32), 0.0)
    y = jax.nn.sigmoid(
        jnp.dot(h, w2_ref[...], preferred_element_type=jnp.float32))

    # Scale: broadcast channel gates over the spatial (lane) axis in x.dtype.
    o_ref[...] = x * y.astype(x.dtype)[:, :, None]


def _se_fused(x3, w1f, w2f, *, max_bt, img_bytes, w_bytes, vmem_cap):
    B, C, HW = x3.shape
    Bt = min(B, max_bt)
    if Bt == B and B >= 2:
        Bt = (B + 1) // 2            # keep >=2 grid steps so both v7x TCs get work
    grid_b = pl.cdiv(B, Bt)

    vmem_limit = int(min(vmem_cap, 5 * Bt * img_bytes + 4 * w_bytes + (8 << 20)))

    return pl.pallas_call(
        _se_fused_kernel,
        out_shape=jax.ShapeDtypeStruct((B, C, HW), x3.dtype),
        grid_spec=pltpu.PrefetchScalarGridSpec(
            num_scalar_prefetch=0,
            grid=(grid_b,),
            in_specs=[
                pl.BlockSpec((Bt, C, HW), lambda b: (b, 0, 0)),
                pl.BlockSpec(w1f.shape, lambda b: (0, 0)),
                pl.BlockSpec(w2f.shape, lambda b: (0, 0)),
            ],
            out_specs=pl.BlockSpec((Bt, C, HW), lambda b: (b, 0, 0)),
        ),
        compiler_params=pltpu.CompilerParams(
            dimension_semantics=("parallel",),
            vmem_limit_bytes=vmem_limit),
    )(x3, w1f, w2f)


# ------------------ two-pass fallback (image too big for VMEM) ------------------

def _pool_sum_kernel(x_ref, sum_ref, *, hw_total, hw_chunk):
    """x_ref: (Rb, hw_chunk) chunk of (B*C, HW); sum_ref: (Rb, 1) f32 accumulator."""
    h = pl.program_id(1)

    @pl.when(h == 0)
    def _():
        sum_ref[...] = jnp.zeros_like(sum_ref)

    x = x_ref[...]
    # Mask lanes past the true spatial extent (last partial HW chunk).
    col = jax.lax.broadcasted_iota(jnp.int32, x.shape, 1) + h * hw_chunk
    xm = jnp.where(col < hw_total, x, jnp.zeros_like(x))
    sum_ref[...] += jnp.sum(xm, axis=-1, keepdims=True, dtype=jnp.float32)


def _scale_kernel(x_ref, g_ref, o_ref):
    """x_ref/o_ref: (Rb, hw_chunk); g_ref: (Rb, 1) f32 per-row gate."""
    o_ref[...] = x_ref[...] * g_ref[...].astype(x_ref.dtype)


def _se_two_pass(x3, w1f, w2f, *, data_budget_bytes, vmem_cap):
    B, C, HW = x3.shape
    R = B * C
    itemsize = jnp.dtype(x3.dtype).itemsize
    sub = _sublane_multiple(itemsize)
    lane = 128

    x2 = x3.reshape(R, HW)

    # Favor wide, lane-dense blocks: a few rows, as many spatial columns as fit.
    Rb = R if R <= 4 * sub else 4 * sub
    max_chunk = data_budget_bytes // max(1, 4 * Rb * itemsize)
    hw_chunk = HW if max_chunk >= HW else max(lane, (max_chunk // lane) * lane)
    grid = (pl.cdiv(R, Rb), pl.cdiv(HW, hw_chunk))

    blk_bytes = _round_up(Rb, sub) * _round_up(hw_chunk, lane) * itemsize
    col_bytes = _round_up(Rb, 8) * lane * 4
    vmem_limit = int(min(vmem_cap, 6 * blk_bytes + 4 * col_bytes + (8 << 20)))

    # Pass 1: per-(b, c) spatial sums; output block (constant across the HW axis)
    # stays resident in VMEM and acts as the f32 accumulator.
    sums = pl.pallas_call(
        functools.partial(_pool_sum_kernel, hw_total=HW, hw_chunk=hw_chunk),
        out_shape=jax.ShapeDtypeStruct((R, 1), jnp.float32),
        grid_spec=pltpu.PrefetchScalarGridSpec(
            num_scalar_prefetch=0,
            grid=grid,
            in_specs=[pl.BlockSpec((Rb, hw_chunk), lambda r, h: (r, h))],
            out_specs=pl.BlockSpec((Rb, 1), lambda r, h: (r, 0)),
        ),
        compiler_params=pltpu.CompilerParams(
            dimension_semantics=("parallel", "arbitrary"),
            vmem_limit_bytes=vmem_limit),
    )(x2)

    # Tiny (B, C) excitation between the two streaming passes (negligible cost).
    pooled = sums.reshape(B, C) * jnp.float32(1.0 / HW)
    gates = jax.nn.sigmoid(jnp.maximum(pooled @ w1f, 0.0) @ w2f)
    gates2 = gates.reshape(R, 1).astype(jnp.float32)

    # Pass 2: out = x * gate, streamed in the same chunks.
    out2 = pl.pallas_call(
        _scale_kernel,
        out_shape=jax.ShapeDtypeStruct((R, HW), x3.dtype),
        grid_spec=pltpu.PrefetchScalarGridSpec(
            num_scalar_prefetch=0,
            grid=grid,
            in_specs=[
                pl.BlockSpec((Rb, hw_chunk), lambda r, h: (r, h)),
                pl.BlockSpec((Rb, 1), lambda r, h: (r, 0)),
            ],
            out_specs=pl.BlockSpec((Rb, hw_chunk), lambda r, h: (r, h)),
        ),
        compiler_params=pltpu.CompilerParams(
            dimension_semantics=("parallel", "parallel"),
            vmem_limit_bytes=vmem_limit),
    )(x2, gates2)
    return out2.reshape(B, C, HW)


# ----------------------------------- wrapper -----------------------------------

def se_layer(x, w1, w2, *, data_budget_bytes=None):
    """x: (B, C, H, W); w1 = fc1.weight.T (C, C//r); w2 = fc2.weight.T (C//r, C)."""
    B, C, H, W = x.shape
    HW = H * W
    itemsize = jnp.dtype(x.dtype).itemsize

    # One-time f32 cast of the (tiny) weights; no per-grid-step cast in-kernel.
    w1f = jnp.asarray(w1, jnp.float32)
    w2f = jnp.asarray(w2, jnp.float32)

    vmem_cap = _vmem_capacity_bytes()
    if data_budget_bytes is None:
        data_budget_bytes = int(0.6 * vmem_cap)

    sub = _sublane_multiple(itemsize)
    # VMEM footprint of one (C, HW) image slice after (sublane, lane) padding.
    img_bytes = _round_up(C, sub) * _round_up(HW, 128) * itemsize
    w_bytes = (_round_up(C, 8) * _round_up(w1f.shape[1], 128)
               + _round_up(w2f.shape[0], 8) * _round_up(C, 128)) * 4

    x3 = x.reshape(B, C, HW)
    max_bt = (data_budget_bytes - 2 * w_bytes) // (4 * img_bytes)  # 2x in + 2x out
    if max_bt >= 1:
        out3 = _se_fused(x3, w1f, w2f, max_bt=int(max_bt),
                         img_bytes=img_bytes, w_bytes=w_bytes, vmem_cap=vmem_cap)
    else:
        # Even a single image does not fit a double-buffered block (v7x cliff):
        # stream in HW chunks instead of failing to compile / spilling.
        out3 = _se_two_pass(x3, w1f, w2f,
                            data_budget_bytes=int(data_budget_bytes),
                            vmem_cap=vmem_cap)
    return out3.reshape(B, C, H, W)


def se_layer_ref(x, w1, w2):
    """Pure-JAX reference mirroring the PyTorch SELayer forward."""
    y = jnp.mean(x, axis=(2, 3))                 # adaptive avg pool -> view(b, c)
    y = jnp.maximum(y @ w1, 0.0)                 # Linear(bias=False) + ReLU
    y = jax.nn.sigmoid(y @ w2)                   # Linear(bias=False) + Sigmoid
    return x * y[:, :, None, None]               # expand_as + multiply


if __name__ == "__main__":
    key = jax.random.PRNGKey(0)

    def make_case(k, B, C, H, W, reduction):
        kx, k1, k2 = jax.random.split(k, 3)
        hidden = C // reduction
        x = jax.random.normal(kx, (B, C, H, W), dtype=jnp.float32)
        w1 = jax.random.normal(k1, (C, hidden), dtype=jnp.float32) / np.sqrt(C)
        w2 = jax.random.normal(k2, (hidden, C), dtype=jnp.float32) / np.sqrt(hidden)
        return x, w1, w2

    cases = [
        # (B, C, H, W), reduction, data_budget_bytes override
        ((4, 16, 16, 16), 4, None),       # aligned C, multi-step fused path
        ((2, 10, 16, 16), 5, None),       # SELayer(channel=10, reduction=5)
        ((2, 10, 12, 12), 5, 32 << 10),   # tiny budget -> two-pass chunked path
    ]
    keys = jax.random.split(key, len(cases))
    for k, ((B, C, H, W), r, budget) in zip(keys, cases):
        x, w1, w2 = make_case(k, B, C, H, W, r)
        out = jax.block_until_ready(se_layer(x, w1, w2, data_budget_bytes=budget))
        ref = jax.block_until_ready(se_layer_ref(x, w1, w2))
        np.testing.assert_allclose(np.asarray(out), np.asarray(ref),
                                   rtol=1e-5, atol=1e-5)

    print("KERNEL_OK")
</pallas_src>

<mosaic_0001>
module attributes {stable_mosaic.version = 11 : i64} {
  func.func @_se_fused_kernel(%arg0: i32, %arg1: memref<2x16x256xf32, #tpu.memory_space<vmem>>, %arg2: memref<16x4xf32, #tpu.memory_space<vmem>>, %arg3: memref<4x16xf32, #tpu.memory_space<vmem>>, %arg4: memref<2x16x256xf32, #tpu.memory_space<vmem>>) attributes {dimension_semantics = [#tpu.dimension_semantics<parallel>], iteration_bounds = array<i64: 2>, scalar_prefetch = 0 : i64, scratch_operands = 0 : i64, tpu.core_type = #tpu.core_type<tc>, window_params = [{transform_indices = @transform_0, window_bounds = array<i64: 2, 16, 256>}, {pipeline_mode = #tpu.pipeline_mode<synchronous>, transform_indices = @transform_1, window_bounds = array<i64: 16, 4>}, {pipeline_mode = #tpu.pipeline_mode<synchronous>, transform_indices = @transform_2, window_bounds = array<i64: 4, 16>}, {transform_indices = @transform_3, window_bounds = array<i64: 2, 16, 256>}]} {
    %c0 = arith.constant 0 : index
    %c0_0 = arith.constant 0 : index
    %c0_1 = arith.constant 0 : index
    %0 = vector.load %arg1[%c0, %c0_0, %c0_1] : memref<2x16x256xf32, #tpu.memory_space<vmem>>, vector<2x16x256xf32>
    %cst = arith.constant dense<0.000000e+00> : vector<2x16xf32>
    %1 = vector.multi_reduction <add>, %0, %cst [2] : vector<2x16x256xf32> to vector<2x16xf32>
    %cst_2 = arith.constant 3.906250e-03 : f32
    %2 = vector.broadcast %cst_2 : f32 to vector<2x16xf32>
    %3 = arith.mulf %1, %2 : vector<2x16xf32>
    %c0_3 = arith.constant 0 : index
    %c0_4 = arith.constant 0 : index
    %4 = vector.load %arg2[%c0_3, %c0_4] : memref<16x4xf32, #tpu.memory_space<vmem>>, vector<16x4xf32>
    %cst_5 = arith.constant dense<0.000000e+00> : vector<2x4xf32>
    %5 = tpu.matmul %3, %4, %cst_5 {dimension_numbers = #tpu.dot_dimension_numbers<[1], [0], [0], [1], [0, 0, 1, 1], [], []>} : vector<2x16xf32>, vector<16x4xf32>, vector<2x4xf32> -> vector<2x4xf32>
    %cst_6 = arith.constant 0.000000e+00 : f32
    %6 = vector.broadcast %cst_6 : f32 to vector<2x4xf32>
    %7 = arith.maximumf %5, %6 : vector<2x4xf32>
    %c0_7 = arith.constant 0 : index
    %c0_8 = arith.constant 0 : index
    %8 = vector.load %arg3[%c0_7, %c0_8] : memref<4x16xf32, #tpu.memory_space<vmem>>, vector<4x16xf32>
    %cst_9 = arith.constant dense<0.000000e+00> : vector<2x16xf32>
    %9 = tpu.matmul %7, %8, %cst_9 {dimension_numbers = #tpu.dot_dimension_numbers<[1], [0], [0], [1], [0, 0, 1, 1], [], []>} : vector<2x4xf32>, vector<4x16xf32>, vector<2x16xf32> -> vector<2x16xf32>
    %10 = arith.negf %9 : vector<2x16xf32>
    %11 = math.exp %10 : vector<2x16xf32>
    %cst_10 = arith.constant 1.000000e+00 : f32
    %12 = vector.broadcast %cst_10 : f32 to vector<2x16xf32>
    %13 = arith.addf %12, %11 : vector<2x16xf32>
    %14 = arith.divf %12, %13 : vector<2x16xf32>
    %15 = vector.shape_cast %14 : vector<2x16xf32> to vector<2x16x1xf32>
    %16 = vector.broadcast %15 : vector<2x16x1xf32> to vector<2x16x256xf32>
    %17 = arith.mulf %0, %16 : vector<2x16x256xf32>
    %c0_11 = arith.constant 0 : index
    %c0_12 = arith.constant 0 : index
    %c0_13 = arith.constant 0 : index
    %18 = vector.load %arg4[%c0_11, %c0_12, %c0_13] : memref<2x16x256xf32, #tpu.memory_space<vmem>>, vector<2x16x256xf32>
    tpu.vector_store %arg4[%c0_11, %c0_12, %c0_13], %17 {strides = array<i32>} : memref<2x16x256xf32, #tpu.memory_space<vmem>>, vector<2x16x256xf32>,
    return
  }
  func.func @transform_0(%arg0: i32) -> (i32, i32, i32) {
    %c0_i32 = arith.constant 0 : i32
    %c0_i32_0 = arith.constant 0 : i32
    %c0_i32_1 = arith.constant 0 : i32
    return %arg0, %c0_i32, %c0_i32_0 : i32, i32, i32
  }
  func.func @transform_1(%arg0: i32) -> (i32, i32) {
    %c0_i32 = arith.constant 0 : i32
    %c0_i32_0 = arith.constant 0 : i32
    %c0_i32_1 = arith.constant 0 : i32
    return %c0_i32, %c0_i32_0 : i32, i32
  }
  func.func @transform_2(%arg0: i32) -> (i32, i32) {
    %c0_i32 = arith.constant 0 : i32
    %c0_i32_0 = arith.constant 0 : i32
    %c0_i32_1 = arith.constant 0 : i32
    return %c0_i32, %c0_i32_0 : i32, i32
  }
  func.func @transform_3(%arg0: i32) -> (i32, i32, i32) {
    %c0_i32 = arith.constant 0 : i32
    %c0_i32_0 = arith.constant 0 : i32
    %c0_i32_1 = arith.constant 0 : i32
    return %arg0, %c0_i32, %c0_i32_0 : i32, i32, i32
  }
}

</mosaic_0001>

<llo_original>
// kernel: tpu_custom_call.1
$region0: #{tpu_custom_call.1}
  #allocation0 [shape = 'u32[]', space=smem, size = 0x4, offset = 0x4, fixed_abs, tag = 'smem constant byte address 0x4 - core index']
  #allocation1 [shape = 'u32[144,128]{1,0:T(1,128)}', space=vmem, size = 0x12000, scoped, tag = 'internal scratch']
  %s0 = inlined_call_operand.hbm [shape: f32[4,16,256], index: 0, kind: input, shape index: {}]
  %s1 = inlined_call_operand.vmem [shape: f32[16,4], index: 1, kind: input, shape index: {}]
  %s2 = inlined_call_operand.vmem [shape: f32[4,16], index: 2, kind: input, shape index: {}]
  %s3 = inlined_call_operand.hbm [shape: f32[4,16,256], index: 3, kind: output, shape index: {}]
  %s4 = sld [smem:[#allocation0]]
  $region49: #{tpu_custom_call.1} parent=0
    _
  %s6 = ssub.s32 1, %s4
  %s7 = scalar_select 0, %s6, %s4
  $region1: #{tpu_custom_call.1} parent=0
    #allocation2 [shape = 'u8[65536]{0}', space=vmem, size = 0x10000, scoped, tag = 'input window, operand 0']
    #allocation3 [shape = 's32[2]{0}', space=sflag, size = 0x8, scoped, tag = 'scoped memory for tpu_custom_call.1']
    #allocation4 [shape = 's32[2]{0}', space=sflag, size = 0x8, scoped, tag = 'scoped memory for tpu_custom_call.1']
    #allocation5 [shape = 'u8[65536]{0}', space=vmem, size = 0x10000, scoped, tag = 'output window, operand 0']
    %8 = vsyncpa [#allocation3], 0
    %s9 = scalar_lea.sflag [#allocation3], 1
    %10 = vsyncpa %s9, 0
    %11 = vsyncpa [#allocation4], 0
    %s12 = scalar_lea.sflag [#allocation4], 1
    %13 = vsyncpa %s12, 0
    loop: start=0, step=1, limit=4
    $region2: #{tpu_custom_call.1} parent=1 // loop_pre_header
      _
    $region3: #{tpu_custom_call.1} parent=1 // loop_header
      %s15 = sphi 0, %s19
      %p16 = scmp.ge.s32.totalorder %s15, 4
      %s25 = sphi 0, %s27
      %s28 = sphi 0, %s25
      %s29 = sphi 0, %s28
      %s45 = sphi 0, %s29
      %s49 = sphi 0, %s49
      %s51 = sphi 0, %s49
      %s52 = sphi 0, %s51
      %s66 = sphi 0, %s52
      %s70 = sphi 0, %s70
      %s72 = sphi 0, %s70
      %s73 = sphi 0, %s72
      %s87 = sphi 0, %s73
      %s93 = sphi 0, %s95
      %s96 = sphi 0, %s93
      %s97 = sphi 0, %s96
      %s113 = sphi 0, %s97
    $region4: #{tpu_custom_call.1} parent=1 // loop_header_branch
      %18 = sbr.rel (%p16) target = $region8
    $region5: #{tpu_custom_call.1} parent=1 // loop_body
      %s20 = ssub.s32 %s15, 1
      %s21 = ssub.s32 %s15, 2
      %s22 = sadd.s32 %s15, 1
      %s23 = ssub.s32 %s15, %s22
      %p24 = scmp.eq.s32.totalorder %s23, 0
      %s26 = sadd.s32 %s25, 1
      %s27 = scalar_select %p24, %s25, %s26
      %p30 = pneg %p24
      %p31 = scmp.eq.s32.totalorder %s15, 1
      %p32 = por %p30, %p31
      %p33 = scmp.ne.s32.totalorder %s25, %s28
      %p34 = scmp.eq.s32.totalorder %s15, 0
      %p35 = por %p33, %p34
      %p36 = scmp.ne.s32.totalorder %s25, %s28
      %p37 = scmp.eq.s32.totalorder %s20, 1
      %p38 = por %p36, %p37
      %p39 = scmp.ne.s32.totalorder %s28, %s29
      %p40 = scmp.eq.s32.totalorder %s20, 0
      %p41 = por %p39, %p40
      %p42 = scmp.ne.s32.totalorder %s28, %s29
      %p43 = scmp.eq.s32.totalorder %s21, 1
      %p44 = por %p42, %p43
      %p46 = scmp.ne.s32.totalorder %s29, %s45
      %p47 = scmp.eq.s32.totalorder %s21, 0
      %p48 = por %p46, %p47
      %s50 = sadd.s32 %s49, 1
      %p53 = scmp.eq.s32.totalorder %s15, 1
      %p54 = scmp.ne.s32.totalorder %s49, %s51
      %p55 = scmp.eq.s32.totalorder %s15, 0
      %p56 = por %p54, %p55
      %p57 = scmp.ne.s32.totalorder %s49, %s51
      %p58 = scmp.eq.s32.totalorder %s20, 1
      %p59 = por %p57, %p58
      %p60 = scmp.ne.s32.totalorder %s51, %s52
      %p61 = scmp.eq.s32.totalorder %s20, 0
      %p62 = por %p60, %p61
      %p63 = scmp.ne.s32.totalorder %s51, %s52
      %p64 = scmp.eq.s32.totalorder %s21, 1
      %p65 = por %p63, %p64
      %p67 = scmp.ne.s32.totalorder %s52, %s66
      %p68 = scmp.eq.s32.totalorder %s21, 0
      %p69 = por %p67, %p68
      %s71 = sadd.s32 %s70, 1
      %p74 = scmp.eq.s32.totalorder %s15, 1
      %p75 = scmp.ne.s32.totalorder %s70, %s72
      %p76 = scmp.eq.s32.totalorder %s15, 0
      %p77 = por %p75, %p76
      %p78 = scmp.ne.s32.totalorder %s70, %s72
      %p79 = scmp.eq.s32.totalorder %s20, 1
      %p80 = por %p78, %p79
      %p81 = scmp.ne.s32.totalorder %s72, %s73
      %p82 = scmp.eq.s32.totalorder %s20, 0
      %p83 = por %p81, %p82
      %p84 = scmp.ne.s32.totalorder %s72, %s73
      %p85 = scmp.eq.s32.totalorder %s21, 1
      %p86 = por %p84, %p85
      %p88 = scmp.ne.s32.totalorder %s73, %s87
      %p89 = scmp.eq.s32.totalorder %s21, 0
      %p90 = por %p88, %p89
      %s91 = ssub.s32 %s15, %s22
      %p92 = scmp.eq.s32.totalorder %s91, 0
      %s94 = sadd.s32 %s93, 1
      %s95 = scalar_select %p92, %s93, %s94
      %p98 = pneg %p92
      %p99 = scmp.eq.s32.totalorder %s15, 1
      %p100 = por %p98, %p99
      %p101 = scmp.ne.s32.totalorder %s93, %s96
      %p102 = scmp.eq.s32.totalorder %s15, 0
      %p103 = por %p101, %p102
      %p104 = scmp.ne.s32.totalorder %s93, %s96
      %p105 = scmp.eq.s32.totalorder %s20, 1
      %p106 = por %p104, %p105
      %p107 = scmp.ne.s32.totalorder %s96, %s97
      %p108 = scmp.eq.s32.totalorder %s20, 0
      %p109 = por %p107, %p108
      %p110 = scmp.ne.s32.totalorder %s96, %s97
      %p111 = scmp.eq.s32.totalorder %s21, 1
      %p112 = por %p110, %p111
      %p114 = scmp.ne.s32.totalorder %s97, %s113
      %p115 = scmp.eq.s32.totalorder %s21, 0
      %p116 = por %p114, %p115
      %p117 = scmp.le.s32.totalorder 1, %s15
      %p118 = scmp.lt.s32.totalorder %s15, 3
      %p119 = pnand %p117, %p118
      %p120 = pneg %p119
      // Predicated region
      $region9: #{tpu_custom_call.1} parent=5 // pred_check
        _
      $region10: #{tpu_custom_call.1} parent=5 // pred_check_branch
        %122 = sbr.rel (%p119) target = $region12
      $region11: #{tpu_custom_call.1} parent=5 // pred_region
        %s123 = ssub.s32 %s15, 1
        // Predicated region
        $region13: #{tpu_custom_call.1} parent=11 // pred_check
          %p124 = pneg %p62
        $region14: #{tpu_custom_call.1} parent=11 // pred_check_branch
          %126 = sbr.rel (%p124) target = $region16
        $region15: #{tpu_custom_call.1} parent=11 // pred_region
          _
        $region16: #{tpu_custom_call.1} parent=11 // pred_fallthru
          _
        // Predicated region
        $region17: #{tpu_custom_call.1} parent=11 // pred_check
          %p127 = pneg %p83
        $region18: #{tpu_custom_call.1} parent=11 // pred_check_branch
          %129 = sbr.rel (%p127) target = $region20
        $region19: #{tpu_custom_call.1} parent=11 // pred_region
          _
        $region20: #{tpu_custom_call.1} parent=11 // pred_fallthru
          _
      $region12: #{tpu_custom_call.1} parent=5 // pred_fallthru
        _
      %p130 = scmp.lt.s32.totalorder %s15, 2
      // Predicated region
      $region21: #{tpu_custom_call.1} parent=5 // pred_check
        %p131 = pneg %p130
      $region22: #{tpu_custom_call.1} parent=5 // pred_check_branch
        %133 = sbr.rel (%p131) target = $region24
      $region23: #{tpu_custom_call.1} parent=5 // pred_region
        // Predicated region
        $region25: #{tpu_custom_call.1} parent=23 // pred_check
          %p134 = pneg %p35
        $region26: #{tpu_custom_call.1} parent=23 // pred_check_branch
          %136 = sbr.rel (%p134) target = $region28
        $region27: #{tpu_custom_call.1} parent=23 // pred_region
          %s137 = sand.u32 %s25, 1
          %s138 = scalar_lea.sflag [#allocation3], %s137
          %s139 = sand.u32 %s25, 1
          %s140 = smul.addr %s139, 64
          %s141 = scalar_lea.vmem [#allocation2], %s140
          %s142 = smul.u32 2, %s15
          %s144 = ssub.s32 1024, 1024
          %145 = vsyncadd %s138, %s144
          %s146 = smul.addr %s142, 4
          %s147 = smul.addr %s146, 128
          %s148 = scalar_lea.hbm %s0, %s147
          %s149 = sshll.u32 %s141, 4
          %s150 = int_to_ptr.vmem [resolvable:$true] %s149
          %155 = dma.hbm_to_vmem [thread:$0]  %s148, 1024, %s150, %s138, 256, 256, 16
        $region28: #{tpu_custom_call.1} parent=23 // pred_fallthru
          _
      $region24: #{tpu_custom_call.1} parent=5 // pred_fallthru
        _
      %p156 = scmp.le.s32.totalorder 1, %s15
      %p157 = scmp.lt.s32.totalorder %s15, 3
      %p158 = pnand %p156, %p157
      %p159 = pneg %p158
      // Predicated region
      $region29: #{tpu_custom_call.1} parent=5 // pred_check
        _
      $region30: #{tpu_custom_call.1} parent=5 // pred_check_branch
        %161 = sbr.rel (%p158) target = $region32
      $region31: #{tpu_custom_call.1} parent=5 // pred_region
        %s162 = ssub.s32 %s15, 1
        %s163 = sand.u32 %s28, 1
        %s164 = scalar_lea.sflag [#allocation3], %s163
        %s165 = sand.u32 %s28, 1
        %s166 = smul.addr %s165, 64
        %s167 = scalar_lea.vmem [#allocation2], %s166
        // Predicated region
        $region33: #{tpu_custom_call.1} parent=31 // pred_check
          %p168 = pneg %p41
        $region34: #{tpu_custom_call.1} parent=31 // pred_check_branch
          %170 = sbr.rel (%p168) target = $region36
        $region35: #{tpu_custom_call.1} parent=31 // pred_region
          %171 = dma.done %s164, 1024
        $region36: #{tpu_custom_call.1} parent=31 // pred_fallthru
          _
        %s172 = sand.u32 %s28, 1
        %s173 = scalar_lea.sflag [#allocation3], %s172
        %s174 = sand.u32 %s28, 1
        %s175 = smul.addr %s174, 64
        %s176 = scalar_lea.vmem [#allocation2], %s175
        %p177 = pneg %p41
        %p178 = pneg %p38
        %p179 = pneg %p62
        %p180 = pneg %p59
        %p181 = pneg %p83
        %p182 = pneg %p80
        %p183 = pneg %p109
        %p184 = pneg %p106
        %s185 = sand.u32 %s96, 1
        %s186 = scalar_lea.sflag [#allocation4], %s185
        %s187 = sand.u32 %s96, 1
        %s188 = smul.addr %s187, 64
        %s189 = scalar_lea.vmem [#allocation5], %s188
        %s190 = smul.u32 2, %s20
        %s191 = smul.u32 2, %s20
        %v192 = vld [vmem:[%s167] sm:$0xff]
        %v193 = vld [vmem:[%s167 + $0x8] sm:$0xff]
        %v194 = vld [vmem:[%s167 + $0x10] sm:$0xff]
        %v195 = vld [vmem:[%s167 + $0x18] sm:$0xff]
        %v196 = vld [vmem:[%s167 + $0x20] sm:$0xff]
        %v197 = vld [vmem:[%s167 + $0x28] sm:$0xff]
        %v198 = vld [vmem:[%s167 + $0x30] sm:$0xff]
        %v199 = vld [vmem:[%s167 + $0x38] sm:$0xff]
        %v200 = vadd.f32 %v192, %v193
        %201 = vadd.xlane.f32.xlu0 %v200
        %v202 = vpop.xlane.xlu0 %201
        %v203 = vadd.f32 %v194, %v195
        %204 = vadd.xlane.f32.xlu0 %v203
        %v205 = vpop.xlane.xlu0 %204
        %v206 = vadd.f32 %v196, %v197
        %207 = vadd.xlane.f32.xlu0 %v206
        %v208 = vpop.xlane.xlu0 %207
        %v209 = vadd.f32 %v198, %v199
        %210 = vadd.xlane.f32.xlu0 %v209
        %v211 = vpop.xlane.xlu0 %210
        %v212 = vmul.f32 %v202, 0.00390625
        %v213 = vmul.f32 %v205, 0.00390625
        %v214 = vmul.f32 %v208, 0.00390625
        %v215 = vmul.f32 %v211, 0.00390625
        %v216 = vld [vmem:[%s1] sm:$0xff]
        %v217 = vld [vmem:[%s1 + $0x8] sm:$0xff]
        %v222 = vlaneseq
        %v223 = vand.u32 %v222, 127
        %v224 = vlaneseq
        %v225 = vshrl.u32 %v224, 7
        %v226 = vsub.s32 %v223, %v225
        %v227 = vrot.slane %v212, %v226
        %v228 = vadd.s32 %v223, 4294967288
        %v229 = vlaneseq
        %v230 = vshrl.u32 %v229, 7
        %v231 = vsub.s32 %v228, %v230
        %v232 = vrot.slane %v213, %v231
        %vm233 = vcmask 130112
        %v234 = vsel %vm233, %v232, %v227
        %v235 = vlaneseq
        %v236 = vshrl.u32 %v235, 7
        %v237 = vsub.s32 %v223, %v236
        %v238 = vrot.slane %v214, %v237
        %v239 = vlaneseq
        %v240 = vshrl.u32 %v239, 7
        %v241 = vsub.s32 %v228, %v240
        %v242 = vrot.slane %v215, %v241
        %v243 = vsel %vm233, %v242, %v238
        %vm244 = vcmask 1041409
        %v245 = vsel %vm244, %v243, %v234
        %vm246 = vcmask 130048
        %v247 = vsel %vm246, %v245, 0
        %249 = vmatprep.subr.mxu0 0.0
        %250 = vmatpush1.msra.mxu0 0.0
        %251 = vmatprep.subr.mxu0 0.0
        %252 = vmatpush1.msra.mxu0 0.0
        %253 = vmatprep.subr.mxu0 0.0
        %254 = vmatpush1.msra.mxu0 0.0
        %255 = vmatprep.subr.mxu0 0.0
        %256 = vmatpush1.msra.mxu0 0.0
        %257 = vmatprep.subr.mxu0 0.0
        %258 = vmatpush1.msra.mxu0 0.0
        %259 = vmatprep.subr.mxu0 0.0
        %260 = vmatpush1.msra.mxu0 0.0
        %261 = vmatprep.subr.mxu0 0.0
        %262 = vmatpush1.msra.mxu0 0.0
        %263 = vmatprep.subr.mxu0 0.0
        %264 = vmatpush1.msra.mxu0 0.0
        %265 = vmatprep.subr.mxu0 0.0
        %266 = vmatpush1.msra.mxu0 0.0
        %267 = vmatprep.subr.mxu0 0.0
        %268 = vmatpush1.msra.mxu0 0.0
        %269 = vmatprep.subr.mxu0 0.0
        %270 = vmatpush1.msra.mxu0 0.0
        %271 = vmatprep.subr.mxu0 0.0
        %272 = vmatpush1.msra.mxu0 0.0
        %273 = vmatprep.subr.mxu0 0.0
        %274 = vmatpush1.msra.mxu0 0.0
        %275 = vmatprep.subr.mxu0 0.0
        %276 = vmatpush1.msra.mxu0 0.0
        %277 = vmatprep.subr.mxu0 0.0
        %278 = vmatpush1.msra.mxu0 %v217
        %279 = vmatprep.subr.mxu0 0.0
        %280 = vmatpush1.msra.mxu0 %v216
        %281 = vmatprep.subr.mxu0 0.0
        %282 = vmatpush2.msra.mxu0 0.0
        %283 = vmatprep.subr.mxu0 0.0
        %284 = vmatpush2.msra.mxu0 0.0
        %285 = vmatprep.subr.mxu0 0.0
        %286 = vmatpush2.msra.mxu0 0.0
        %287 = vmatprep.subr.mxu0 0.0
        %288 = vmatpush2.msra.mxu0 0.0
        %289 = vmatprep.subr.mxu0 0.0
        %290 = vmatpush2.msra.mxu0 0.0
        %291 = vmatprep.subr.mxu0 0.0
        %292 = vmatpush2.msra.mxu0 0.0
        %293 = vmatprep.subr.mxu0 0.0
        %294 = vmatpush2.msra.mxu0 0.0
        %295 = vmatprep.subr.mxu0 0.0
        %296 = vmatpush2.msra.mxu0 0.0
        %297 = vmatprep.subr.mxu0 0.0
        %298 = vmatpush2.msra.mxu0 0.0
        %299 = vmatprep.subr.mxu0 0.0
        %300 = vmatpush2.msra.mxu0 0.0
        %301 = vmatprep.subr.mxu0 0.0
        %302 = vmatpush2.msra.mxu0 0.0
        %303 = vmatprep.subr.mxu0 0.0
        %304 = vmatpush2.msra.mxu0 0.0
        %305 = vmatprep.subr.mxu0 0.0
        %306 = vmatpush2.msra.mxu0 0.0
        %307 = vmatprep.subr.mxu0 0.0
        %308 = vmatpush2.msra.mxu0 0.0
        %309 = vmatprep.subr.mxu0 0.0
        %310 = vmatpush2.msra.mxu0 0.0
        %311 = vmatprep.subr.mxu0 0.0
        %312 = vmatpush2.msra.mxu0 0.0
        %313 = vmatprep.mubr.f32.mxu0 0.0
        %314 = vmatmul.mubr.f32.gmra.mxu0 %v247
        %v315 = vpop.f32.mrf.mxu0
        %v316 = vadd.f32 0.0, %v315
        %v317 = vpop.f32.mrf.mxu0
        %318 = vdwg.mxu0
        %v319 = vmax.f32 %v316, 0.0
        %v320 = vld [vmem:[%s2] sm:$0xf]
        %vm321 = vcmask 31744
        %v323 = vsel %vm321, %v319, 0
        %vm325 = vcmask 1043456
        %v327 = vsel %vm325, %v320, 0
        %329 = vmatprep.subr.mxu0 0.0
        %330 = vmatpush1.msra.mxu0 0.0
        %331 = vmatprep.subr.mxu0 0.0
        %332 = vmatpush1.msra.mxu0 0.0
        %333 = vmatprep.subr.mxu0 0.0
        %334 = vmatpush1.msra.mxu0 0.0
        %335 = vmatprep.subr.mxu0 0.0
        %336 = vmatpush1.msra.mxu0 0.0
        %337 = vmatprep.subr.mxu0 0.0
        %338 = vmatpush1.msra.mxu0 0.0
        %339 = vmatprep.subr.mxu0 0.0
        %340 = vmatpush1.msra.mxu0 0.0
        %341 = vmatprep.subr.mxu0 0.0
        %342 = vmatpush1.msra.mxu0 0.0
        %343 = vmatprep.subr.mxu0 0.0
        %344 = vmatpush1.msra.mxu0 0.0
        %345 = vmatprep.subr.mxu0 0.0
        %346 = vmatpush1.msra.mxu0 0.0
        %347 = vmatprep.subr.mxu0 0.0
        %348 = vmatpush1.msra.mxu0 0.0
        %349 = vmatprep.subr.mxu0 0.0
        %350 = vmatpush1.msra.mxu0 0.0
        %351 = vmatprep.subr.mxu0 0.0
        %352 = vmatpush1.msra.mxu0 0.0
        %353 = vmatprep.subr.mxu0 0.0
        %354 = vmatpush1.msra.mxu0 0.0
        %355 = vmatprep.subr.mxu0 0.0
        %356 = vmatpush1.msra.mxu0 0.0
        %357 = vmatprep.subr.mxu0 0.0
        %358 = vmatpush1.msra.mxu0 0.0
        %359 = vmatprep.subr.mxu0 0.0
        %360 = vmatpush1.msra.mxu0 %v327
        %361 = vmatprep.subr.mxu0 0.0
        %362 = vmatpush2.msra.mxu0 0.0
        %363 = vmatprep.subr.mxu0 0.0
        %364 = vmatpush2.msra.mxu0 0.0
        %365 = vmatprep.subr.mxu0 0.0
        %366 = vmatpush2.msra.mxu0 0.0
        %367 = vmatprep.subr.mxu0 0.0
        %368 = vmatpush2.msra.mxu0 0.0
        %369 = vmatprep.subr.mxu0 0.0
        %370 = vmatpush2.msra.mxu0 0.0
        %371 = vmatprep.subr.mxu0 0.0
        %372 = vmatpush2.msra.mxu0 0.0
        %373 = vmatprep.subr.mxu0 0.0
        %374 = vmatpush2.msra.mxu0 0.0
        %375 = vmatprep.subr.mxu0 0.0
        %376 = vmatpush2.msra.mxu0 0.0
        %377 = vmatprep.subr.mxu0 0.0
        %378 = vmatpush2.msra.mxu0 0.0
        %379 = vmatprep.subr.mxu0 0.0
        %380 = vmatpush2.msra.mxu0 0.0
        %381 = vmatprep.subr.mxu0 0.0
        %382 = vmatpush2.msra.mxu0 0.0
        %383 = vmatprep.subr.mxu0 0.0
        %384 = vmatpush2.msra.mxu0 0.0
        %385 = vmatprep.subr.mxu0 0.0
        %386 = vmatpush2.msra.mxu0 0.0
        %387 = vmatprep.subr.mxu0 0.0
        %388 = vmatpush2.msra.mxu0 0.0
        %389 = vmatprep.subr.mxu0 0.0
        %390 = vmatpush2.msra.mxu0 0.0
        %391 = vmatprep.subr.mxu0 0.0
        %392 = vmatpush2.msra.mxu0 0.0
        %393 = vmatprep.mubr.f32.mxu0 0.0
        %394 = vmatmul.mubr.f32.gmra.mxu0 %v323
        %v395 = vpop.f32.mrf.mxu0
        %v396 = vadd.f32 0.0, %v395
        %v397 = vpop.f32.mrf.mxu0
        %398 = vdwg.mxu0
        %v399 = vxor.u32 %v396, 2147483648
        %v400 = vmul.f32 %v399, 1.442695
        %v401 = vpow.pop %v400
        %v402 = vadd.f32 %v401, 1.0
        %v403 = vrcp.pop %v402
        %v404 = vmul.f32 1.0, %v403
        %v405 = vlaneseq
        %v406 = vshrl.u32 %v405, 7
        %v407 = vsub.s32 0, %v406
        %v408 = vrot.slane %v404, %v407
        %410 = vbcast.lane.b32.xlu0 %v408, 256
        %v411 = vpop.permute.xlu0 %410
        %s413 = sor.u32 256, 8
        %414 = vbcast.lane.b32.xlu0 %v408, %s413
        %v415 = vpop.permute.xlu0 %414
        %v416 = vlaneseq
        %v417 = vshrl.u32 %v416, 7
        %v418 = vsub.s32 1, %v417
        %v419 = vrot.slane %v404, %v418
        %421 = vbcast.lane.b32.xlu0 %v419, 256
        %v422 = vpop.permute.xlu0 %421
        %s424 = sor.u32 256, 8
        %425 = vbcast.lane.b32.xlu0 %v419, %s424
        %v426 = vpop.permute.xlu0 %425
        %v427 = vmul.f32 %v192, %v411
        %v428 = vmul.f32 %v193, %v411
        %v429 = vmul.f32 %v194, %v415
        %v430 = vmul.f32 %v195, %v415
        %v431 = vmul.f32 %v196, %v422
        %v432 = vmul.f32 %v197, %v422
        %v433 = vmul.f32 %v198, %v426
        %v434 = vmul.f32 %v199, %v426
        %435 = vst [vmem:[%s189] sm:$0xff] %v427
        %436 = vst [vmem:[%s189 + $0x8] sm:$0xff] %v428
        %437 = vst [vmem:[%s189 + $0x10] sm:$0xff] %v429
        %438 = vst [vmem:[%s189 + $0x18] sm:$0xff] %v430
        %439 = vst [vmem:[%s189 + $0x20] sm:$0xff] %v431
        %440 = vst [vmem:[%s189 + $0x28] sm:$0xff] %v432
        %441 = vst [vmem:[%s189 + $0x30] sm:$0xff] %v433
        %442 = vst [vmem:[%s189 + $0x38] sm:$0xff] %v434
        %s443 = sand.u32 %s96, 1
        %s444 = scalar_lea.sflag [#allocation4], %s443
        %s445 = sand.u32 %s96, 1
        %s446 = smul.addr %s445, 64
        %s447 = scalar_lea.vmem [#allocation5], %s446
        // Predicated region
        $region37: #{tpu_custom_call.1} parent=31 // pred_check
          %p448 = pneg %p106
        $region38: #{tpu_custom_call.1} parent=31 // pred_check_branch
          %450 = sbr.rel (%p448) target = $region40
        $region39: #{tpu_custom_call.1} parent=31 // pred_region
          %s451 = smul.u32 2, %s20
          %s453 = ssub.s32 1024, 1024
          %454 = vsyncadd %s444, %s453
          %s455 = smul.addr %s451, 4
          %s456 = smul.addr %s455, 128
          %s457 = scalar_lea.hbm %s3, %s456
          %s458 = sshll.u32 %s447, 4
          %s459 = int_to_ptr.vmem [resolvable:$true] %s458
          %464 = dma.vmem_to_hbm [thread:$0]  %s459, 1024, %s457, %s444, 256, 256, 16
        $region40: #{tpu_custom_call.1} parent=31 // pred_fallthru
          _
      $region32: #{tpu_custom_call.1} parent=5 // pred_fallthru
        _
      %p465 = scmp.le.s32.totalorder 2, %s15
      // Predicated region
      $region41: #{tpu_custom_call.1} parent=5 // pred_check
        %p466 = pneg %p465
      $region42: #{tpu_custom_call.1} parent=5 // pred_check_branch
        %468 = sbr.rel (%p466) target = $region44
      $region43: #{tpu_custom_call.1} parent=5 // pred_region
        %s469 = ssub.s32 %s15, 2
        // Predicated region
        $region45: #{tpu_custom_call.1} parent=43 // pred_check
          %p470 = pneg %p112
        $region46: #{tpu_custom_call.1} parent=43 // pred_check_branch
          %472 = sbr.rel (%p470) target = $region48
        $region47: #{tpu_custom_call.1} parent=43 // pred_region
          %s473 = sand.u32 %s97, 1
          %s474 = scalar_lea.sflag [#allocation4], %s473
          %s475 = sand.u32 %s97, 1
          %s476 = smul.addr %s475, 64
          %s477 = scalar_lea.vmem [#allocation5], %s476
          %478 = dma.done %s474, 1024
        $region48: #{tpu_custom_call.1} parent=43 // pred_fallthru
          _
      $region44: #{tpu_custom_call.1} parent=5 // pred_fallthru
        _
    $region6: #{tpu_custom_call.1} parent=1 // loop_footer
      %s19 = sadd.s32 1, %s15
    $region7: #{tpu_custom_call.1} parent=1 // loop_footer_branch
      %14 = sbr.rel target = $region3
    $region8: #{tpu_custom_call.1} parent=1 // loop_exit
      _
    %479 = vsyncpa [#allocation3], 1
    %s480 = scalar_lea.sflag [#allocation3], 1
    %481 = vsyncpa %s480, 1
    %482 = vsyncpa [#allocation4], 1
    %s483 = scalar_lea.sflag [#allocation4], 1
    %484 = vsyncpa %s483, 1

</llo_original>
